<compile_context>
chip_gen: v7x
topology: tpu7x:2x2x1
jax: 0.10.0
libtpu: 0.0.40
codegen_flags: <defaults>
</compile_context>

<pallas_src>
import jax
import jax.numpy as jnp
from jax.experimental import pallas as pl
from jax.experimental.pallas import tpu as pltpu


def _conv_kernel(x_ref, b_ref, bias_ref, o_ref, lhs_ref):
    """Same-padding 2-D conv as ONE im2row matmul on the MXU.

    x_ref    : (N, H, W)        unpadded input                     VMEM
    b_ref    : (ks*W, W_out)    banded weights, K-concat layout    VMEM
    bias_ref : (1,)             conv bias                          SMEM
    o_ref    : (N*H, W_out)     output (lane-dense, W_out >= 128)  VMEM
    lhs_ref  : (N*H, ks*W)      im2row staging buffer              VMEM scratch
    """
    N, H, W = x_ref.shape
    KW, _ = b_ref.shape
    ks = KW // W
    pad = ks // 2

    # Stage the im2row LHS for the whole batch.  Row (n*H + i), column block kh
    # holds x[n, i + kh - pad, :] (zero for out-of-range rows = vertical halo).
    lhs_ref[...] = jnp.zeros_like(lhs_ref)      # zeroes the halo rows per block
    for n in range(N):                          # static unroll: N*ks slab stores
        for kh in range(ks):
            dst_lo = max(0, pad - kh)           # first valid output row
            dst_hi = min(H, H + pad - kh)       # one past last valid output row
            rows = dst_hi - dst_lo
            src_lo = dst_lo + kh - pad          # matching input row
            lhs_ref[n * H + dst_lo:n * H + dst_lo + rows,
                    kh * W:(kh + 1) * W] = x_ref[n, src_lo:src_lo + rows, :]

    # Single MXU matmul for the whole batch: (N*H, ks*W) @ (ks*W, W_out).
    acc = jnp.dot(lhs_ref[...], b_ref[...],
                  preferred_element_type=jnp.float32,
                  precision=jax.lax.Precision.HIGHEST)
    o_ref[...] = (acc + bias_ref[0]).astype(o_ref.dtype)


def _banded_weights_kconcat(weight, W, W_out):
    """Fold the (ks, ks) conv weight + horizontal same-padding into a single
    (ks*W, W_out) matrix B such that, for an im2row LHS row
        lhs[kh*W + c] = x[i + kh - pad, c],
    we get  (lhs @ B)[j] = sum_{kh,kw} weight[kh, kw] * x[i+kh-pad, j+kw-pad]
    with zero contribution for out-of-range (padded) columns."""
    ks = weight.shape[0]
    pad = ks // 2
    c = jnp.arange(W)[:, None]                # (W, 1)  input column in a block
    j = jnp.arange(W_out)[None, :]            # (1, W_out) output column
    kw = c - j + pad                          # (W, W_out)
    valid = (kw >= 0) & (kw < ks) & (j < W)
    kw_c = jnp.clip(kw, 0, ks - 1)
    taps = weight[:, kw_c]                    # (ks, W, W_out)
    banded = jnp.where(valid[None, :, :], taps, 0.0).astype(jnp.float32)
    return banded.reshape(ks * W, W_out)      # K-concat layout


def conv2d_pallas(x_nchw, weight, bias, ks):
    """x_nchw: (N, 1, H, W) float32.  Returns (N, 1, H, W) float32."""
    N, C, H, W = x_nchw.shape
    assert C == 1
    assert weight.shape == (ks, ks)

    # Lane-dense output width (multiple of 128) -> unmasked 128-lane stores.
    W_out = max(128, ((W + 127) // 128) * 128)

    x = x_nchw[:, 0, :, :]                                       # (N, H, W)
    B = _banded_weights_kconcat(weight.astype(jnp.float32), W, W_out)

    out = pl.pallas_call(
        _conv_kernel,
        out_shape=jax.ShapeDtypeStruct((N * H, W_out), jnp.float32),
        in_specs=[
            pl.BlockSpec(memory_space=pltpu.MemorySpace.VMEM),   # x
            pl.BlockSpec(memory_space=pltpu.MemorySpace.VMEM),   # banded weights
            pl.BlockSpec(memory_space=pltpu.MemorySpace.SMEM),   # bias scalar
        ],
        out_specs=pl.BlockSpec(memory_space=pltpu.MemorySpace.VMEM),
        scratch_shapes=[pltpu.VMEM((N * H, ks * W), jnp.float32)],
        compiler_params=pltpu.CompilerParams(vmem_limit_bytes=32 * 1024 * 1024),
    )(x, B, bias)

    # TODO(synk): avoid this slice copy for large outputs (see header note).
    return out.reshape(N, H, W_out)[:, :, :W][:, None, :, :]     # (N, 1, H, W)


if __name__ == "__main__":
    ks = 9
    N, C, H, W = 2, 1, 16, 16

    # Deterministic parameters, matching the module's __init__:
    #   nn.init.constant_(weight, 1), nn.init.constant_(bias, 0)
    weight = jnp.ones((ks, ks), jnp.float32)   # Conv2d(1,1,ks) weight squeezed
    bias = jnp.zeros((1,), jnp.float32)

    key = jax.random.PRNGKey(0)
    x = jax.random.normal(key, (N, C, H, W), dtype=jnp.float32)

    y = conv2d_pallas(x, weight, bias, ks)
    y = jax.block_until_ready(y)

    # Reference check against XLA's conv (same semantics as torch Conv2d).
    y_ref = jax.lax.conv_general_dilated(
        x, weight[None, None, :, :],
        window_strides=(1, 1),
        padding=((ks // 2, ks // 2), (ks // 2, ks // 2)),
        dimension_numbers=("NCHW", "OIHW", "NCHW"),
        precision=jax.lax.Precision.HIGHEST,
    )
    assert y.shape == (N, C, H, W)
    assert jnp.allclose(y, y_ref, atol=1e-3, rtol=1e-3)

    print("KERNEL_OK")
</pallas_src>

<mosaic_0001>
module attributes {stable_mosaic.version = 11 : i64} {
  func.func @_conv_kernel(%arg0: memref<2x16x16xf32, #tpu.memory_space<vmem>>, %arg1: memref<144x128xf32, #tpu.memory_space<vmem>>, %arg2: memref<1xf32, #tpu.memory_space<smem>>, %arg3: memref<32x128xf32, #tpu.memory_space<vmem>>, %arg4: memref<32x144xf32, #tpu.memory_space<vmem>>) attributes {dimension_semantics = [], scalar_prefetch = 0 : i64, scratch_operands = 1 : i64, tpu.core_type = #tpu.core_type<tc>} {
    %cst = arith.constant 0.000000e+00 : f32
    %0 = vector.broadcast %cst : f32 to vector<32x144xf32>
    %c0 = arith.constant 0 : index
    %c0_0 = arith.constant 0 : index
    %1 = vector.load %arg4[%c0, %c0_0] : memref<32x144xf32, #tpu.memory_space<vmem>>, vector<32x144xf32>
    tpu.vector_store %arg4[%c0, %c0_0], %0 {strides = array<i32>} : memref<32x144xf32, #tpu.memory_space<vmem>>, vector<32x144xf32>,
    %c0_1 = arith.constant 0 : index
    %c0_2 = arith.constant 0 : index
    %c0_3 = arith.constant 0 : index
    %2 = vector.load %arg0[%c0_1, %c0_2, %c0_3] : memref<2x16x16xf32, #tpu.memory_space<vmem>>, vector<1x12x16xf32>
    %3 = vector.shape_cast %2 : vector<1x12x16xf32> to vector<12x16xf32>
    %c4 = arith.constant 4 : index
    %c0_4 = arith.constant 0 : index
    %4 = vector.load %arg4[%c4, %c0_4] : memref<32x144xf32, #tpu.memory_space<vmem>>, vector<12x16xf32>
    tpu.vector_store %arg4[%c4, %c0_4], %3 {strides = array<i32>} : memref<32x144xf32, #tpu.memory_space<vmem>>, vector<12x16xf32>,
    %c0_5 = arith.constant 0 : index
    %c0_6 = arith.constant 0 : index
    %c0_7 = arith.constant 0 : index
    %5 = vector.load %arg0[%c0_5, %c0_6, %c0_7] : memref<2x16x16xf32, #tpu.memory_space<vmem>>, vector<1x13x16xf32>
    %6 = vector.shape_cast %5 : vector<1x13x16xf32> to vector<13x16xf32>
    %c3 = arith.constant 3 : index
    %c16 = arith.constant 16 : index
    %7 = vector.load %arg4[%c3, %c16] : memref<32x144xf32, #tpu.memory_space<vmem>>, vector<13x16xf32>
    tpu.vector_store %arg4[%c3, %c16], %6 {strides = array<i32>} : memref<32x144xf32, #tpu.memory_space<vmem>>, vector<13x16xf32>,
    %c0_8 = arith.constant 0 : index
    %c0_9 = arith.constant 0 : index
    %c0_10 = arith.constant 0 : index
    %8 = vector.load %arg0[%c0_8, %c0_9, %c0_10] : memref<2x16x16xf32, #tpu.memory_space<vmem>>, vector<1x14x16xf32>
    %9 = vector.shape_cast %8 : vector<1x14x16xf32> to vector<14x16xf32>
    %c2 = arith.constant 2 : index
    %c32 = arith.constant 32 : index
    %10 = vector.load %arg4[%c2, %c32] : memref<32x144xf32, #tpu.memory_space<vmem>>, vector<14x16xf32>
    tpu.vector_store %arg4[%c2, %c32], %9 {strides = array<i32>} : memref<32x144xf32, #tpu.memory_space<vmem>>, vector<14x16xf32>,
    %c0_11 = arith.constant 0 : index
    %c0_12 = arith.constant 0 : index
    %c0_13 = arith.constant 0 : index
    %11 = vector.load %arg0[%c0_11, %c0_12, %c0_13] : memref<2x16x16xf32, #tpu.memory_space<vmem>>, vector<1x15x16xf32>
    %12 = vector.shape_cast %11 : vector<1x15x16xf32> to vector<15x16xf32>
    %c1 = arith.constant 1 : index
    %c48 = arith.constant 48 : index
    %13 = vector.load %arg4[%c1, %c48] : memref<32x144xf32, #tpu.memory_space<vmem>>, vector<15x16xf32>
    tpu.vector_store %arg4[%c1, %c48], %12 {strides = array<i32>} : memref<32x144xf32, #tpu.memory_space<vmem>>, vector<15x16xf32>,
    %c0_14 = arith.constant 0 : index
    %c0_15 = arith.constant 0 : index
    %c0_16 = arith.constant 0 : index
    %14 = vector.load %arg0[%c0_14, %c0_15, %c0_16] : memref<2x16x16xf32, #tpu.memory_space<vmem>>, vector<1x16x16xf32>
    %15 = vector.shape_cast %14 : vector<1x16x16xf32> to vector<16x16xf32>
    %c0_17 = arith.constant 0 : index
    %c64 = arith.constant 64 : index
    %16 = vector.load %arg4[%c0_17, %c64] : memref<32x144xf32, #tpu.memory_space<vmem>>, vector<16x16xf32>
    tpu.vector_store %arg4[%c0_17, %c64], %15 {strides = array<i32>} : memref<32x144xf32, #tpu.memory_space<vmem>>, vector<16x16xf32>,
    %c0_18 = arith.constant 0 : index
    %c1_19 = arith.constant 1 : index
    %c0_20 = arith.constant 0 : index
    %17 = vector.load %arg0[%c0_18, %c1_19, %c0_20] : memref<2x16x16xf32, #tpu.memory_space<vmem>>, vector<1x15x16xf32>
    %18 = vector.shape_cast %17 : vector<1x15x16xf32> to vector<15x16xf32>
    %c0_21 = arith.constant 0 : index
    %c80 = arith.constant 80 : index
    %19 = vector.load %arg4[%c0_21, %c80] : memref<32x144xf32, #tpu.memory_space<vmem>>, vector<15x16xf32>
    tpu.vector_store %arg4[%c0_21, %c80], %18 {strides = array<i32>} : memref<32x144xf32, #tpu.memory_space<vmem>>, vector<15x16xf32>,
    %c0_22 = arith.constant 0 : index
    %c2_23 = arith.constant 2 : index
    %c0_24 = arith.constant 0 : index
    %20 = vector.load %arg0[%c0_22, %c2_23, %c0_24] : memref<2x16x16xf32, #tpu.memory_space<vmem>>, vector<1x14x16xf32>
    %21 = vector.shape_cast %20 : vector<1x14x16xf32> to vector<14x16xf32>
    %c0_25 = arith.constant 0 : index
    %c96 = arith.constant 96 : index
    %22 = vector.load %arg4[%c0_25, %c96] : memref<32x144xf32, #tpu.memory_space<vmem>>, vector<14x16xf32>
    tpu.vector_store %arg4[%c0_25, %c96], %21 {strides = array<i32>} : memref<32x144xf32, #tpu.memory_space<vmem>>, vector<14x16xf32>,
    %c0_26 = arith.constant 0 : index
    %c3_27 = arith.constant 3 : index
    %c0_28 = arith.constant 0 : index
    %23 = vector.load %arg0[%c0_26, %c3_27, %c0_28] : memref<2x16x16xf32, #tpu.memory_space<vmem>>, vector<1x13x16xf32>
    %24 = vector.shape_cast %23 : vector<1x13x16xf32> to vector<13x16xf32>
    %c0_29 = arith.constant 0 : index
    %c112 = arith.constant 112 : index
    %25 = vector.load %arg4[%c0_29, %c112] : memref<32x144xf32, #tpu.memory_space<vmem>>, vector<13x16xf32>
    tpu.vector_store %arg4[%c0_29, %c112], %24 {strides = array<i32>} : memref<32x144xf32, #tpu.memory_space<vmem>>, vector<13x16xf32>,
    %c0_30 = arith.constant 0 : index
    %c4_31 = arith.constant 4 : index
    %c0_32 = arith.constant 0 : index
    %26 = vector.load %arg0[%c0_30, %c4_31, %c0_32] : memref<2x16x16xf32, #tpu.memory_space<vmem>>, vector<1x12x16xf32>
    %27 = vector.shape_cast %26 : vector<1x12x16xf32> to vector<12x16xf32>
    %c0_33 = arith.constant 0 : index
    %c128 = arith.constant 128 : index
    %28 = vector.load %arg4[%c0_33, %c128] : memref<32x144xf32, #tpu.memory_space<vmem>>, vector<12x16xf32>
    tpu.vector_store %arg4[%c0_33, %c128], %27 {strides = array<i32>} : memref<32x144xf32, #tpu.memory_space<vmem>>, vector<12x16xf32>,
    %c1_34 = arith.constant 1 : index
    %c0_35 = arith.constant 0 : index
    %c0_36 = arith.constant 0 : index
    %29 = vector.load %arg0[%c1_34, %c0_35, %c0_36] : memref<2x16x16xf32, #tpu.memory_space<vmem>>, vector<1x12x16xf32>
    %30 = vector.shape_cast %29 : vector<1x12x16xf32> to vector<12x16xf32>
    %c20 = arith.constant 20 : index
    %c0_37 = arith.constant 0 : index
    %31 = vector.load %arg4[%c20, %c0_37] : memref<32x144xf32, #tpu.memory_space<vmem>>, vector<12x16xf32>
    tpu.vector_store %arg4[%c20, %c0_37], %30 {strides = array<i32>} : memref<32x144xf32, #tpu.memory_space<vmem>>, vector<12x16xf32>,
    %c1_38 = arith.constant 1 : index
    %c0_39 = arith.constant 0 : index
    %c0_40 = arith.constant 0 : index
    %32 = vector.load %arg0[%c1_38, %c0_39, %c0_40] : memref<2x16x16xf32, #tpu.memory_space<vmem>>, vector<1x13x16xf32>
    %33 = vector.shape_cast %32 : vector<1x13x16xf32> to vector<13x16xf32>
    %c19 = arith.constant 19 : index
    %c16_41 = arith.constant 16 : index
    %34 = vector.load %arg4[%c19, %c16_41] : memref<32x144xf32, #tpu.memory_space<vmem>>, vector<13x16xf32>
    tpu.vector_store %arg4[%c19, %c16_41], %33 {strides = array<i32>} : memref<32x144xf32, #tpu.memory_space<vmem>>, vector<13x16xf32>,
    %c1_42 = arith.constant 1 : index
    %c0_43 = arith.constant 0 : index
    %c0_44 = arith.constant 0 : index
    %35 = vector.load %arg0[%c1_42, %c0_43, %c0_44] : memref<2x16x16xf32, #tpu.memory_space<vmem>>, vector<1x14x16xf32>
    %36 = vector.shape_cast %35 : vector<1x14x16xf32> to vector<14x16xf32>
    %c18 = arith.constant 18 : index
    %c32_45 = arith.constant 32 : index
    %37 = vector.load %arg4[%c18, %c32_45] : memref<32x144xf32, #tpu.memory_space<vmem>>, vector<14x16xf32>
    tpu.vector_store %arg4[%c18, %c32_45], %36 {strides = array<i32>} : memref<32x144xf32, #tpu.memory_space<vmem>>, vector<14x16xf32>,
    %c1_46 = arith.constant 1 : index
    %c0_47 = arith.constant 0 : index
    %c0_48 = arith.constant 0 : index
    %38 = vector.load %arg0[%c1_46, %c0_47, %c0_48] : memref<2x16x16xf32, #tpu.memory_space<vmem>>, vector<1x15x16xf32>
    %39 = vector.shape_cast %38 : vector<1x15x16xf32> to vector<15x16xf32>
    %c17 = arith.constant 17 : index
    %c48_49 = arith.constant 48 : index
    %40 = vector.load %arg4[%c17, %c48_49] : memref<32x144xf32, #tpu.memory_space<vmem>>, vector<15x16xf32>
    tpu.vector_store %arg4[%c17, %c48_49], %39 {strides = array<i32>} : memref<32x144xf32, #tpu.memory_space<vmem>>, vector<15x16xf32>,
    %c1_50 = arith.constant 1 : index
    %c0_51 = arith.constant 0 : index
    %c0_52 = arith.constant 0 : index
    %41 = vector.load %arg0[%c1_50, %c0_51, %c0_52] : memref<2x16x16xf32, #tpu.memory_space<vmem>>, vector<1x16x16xf32>
    %42 = vector.shape_cast %41 : vector<1x16x16xf32> to vector<16x16xf32>
    %c16_53 = arith.constant 16 : index
    %c64_54 = arith.constant 64 : index
    %43 = vector.load %arg4[%c16_53, %c64_54] : memref<32x144xf32, #tpu.memory_space<vmem>>, vector<16x16xf32>
    tpu.vector_store %arg4[%c16_53, %c64_54], %42 {strides = array<i32>} : memref<32x144xf32, #tpu.memory_space<vmem>>, vector<16x16xf32>,
    %c1_55 = arith.constant 1 : index
    %c1_56 = arith.constant 1 : index
    %c0_57 = arith.constant 0 : index
    %44 = vector.load %arg0[%c1_55, %c1_56, %c0_57] : memref<2x16x16xf32, #tpu.memory_space<vmem>>, vector<1x15x16xf32>
    %45 = vector.shape_cast %44 : vector<1x15x16xf32> to vector<15x16xf32>
    %c16_58 = arith.constant 16 : index
    %c80_59 = arith.constant 80 : index
    %46 = vector.load %arg4[%c16_58, %c80_59] : memref<32x144xf32, #tpu.memory_space<vmem>>, vector<15x16xf32>
    tpu.vector_store %arg4[%c16_58, %c80_59], %45 {strides = array<i32>} : memref<32x144xf32, #tpu.memory_space<vmem>>, vector<15x16xf32>,
    %c1_60 = arith.constant 1 : index
    %c2_61 = arith.constant 2 : index
    %c0_62 = arith.constant 0 : index
    %47 = vector.load %arg0[%c1_60, %c2_61, %c0_62] : memref<2x16x16xf32, #tpu.memory_space<vmem>>, vector<1x14x16xf32>
    %48 = vector.shape_cast %47 : vector<1x14x16xf32> to vector<14x16xf32>
    %c16_63 = arith.constant 16 : index
    %c96_64 = arith.constant 96 : index
    %49 = vector.load %arg4[%c16_63, %c96_64] : memref<32x144xf32, #tpu.memory_space<vmem>>, vector<14x16xf32>
    tpu.vector_store %arg4[%c16_63, %c96_64], %48 {strides = array<i32>} : memref<32x144xf32, #tpu.memory_space<vmem>>, vector<14x16xf32>,
    %c1_65 = arith.constant 1 : index
    %c3_66 = arith.constant 3 : index
    %c0_67 = arith.constant 0 : index
    %50 = vector.load %arg0[%c1_65, %c3_66, %c0_67] : memref<2x16x16xf32, #tpu.memory_space<vmem>>, vector<1x13x16xf32>
    %51 = vector.shape_cast %50 : vector<1x13x16xf32> to vector<13x16xf32>
    %c16_68 = arith.constant 16 : index
    %c112_69 = arith.constant 112 : index
    %52 = vector.load %arg4[%c16_68, %c112_69] : memref<32x144xf32, #tpu.memory_space<vmem>>, vector<13x16xf32>
    tpu.vector_store %arg4[%c16_68, %c112_69], %51 {strides = array<i32>} : memref<32x144xf32, #tpu.memory_space<vmem>>, vector<13x16xf32>,
    %c1_70 = arith.constant 1 : index
    %c4_71 = arith.constant 4 : index
    %c0_72 = arith.constant 0 : index
    %53 = vector.load %arg0[%c1_70, %c4_71, %c0_72] : memref<2x16x16xf32, #tpu.memory_space<vmem>>, vector<1x12x16xf32>
    %54 = vector.shape_cast %53 : vector<1x12x16xf32> to vector<12x16xf32>
    %c16_73 = arith.constant 16 : index
    %c128_74 = arith.constant 128 : index
    %55 = vector.load %arg4[%c16_73, %c128_74] : memref<32x144xf32, #tpu.memory_space<vmem>>, vector<12x16xf32>
    tpu.vector_store %arg4[%c16_73, %c128_74], %54 {strides = array<i32>} : memref<32x144xf32, #tpu.memory_space<vmem>>, vector<12x16xf32>,
    %c0_75 = arith.constant 0 : index
    %c0_76 = arith.constant 0 : index
    %56 = vector.load %arg4[%c0_75, %c0_76] : memref<32x144xf32, #tpu.memory_space<vmem>>, vector<32x144xf32>
    %c0_77 = arith.constant 0 : index
    %c0_78 = arith.constant 0 : index
    %57 = vector.load %arg1[%c0_77, %c0_78] : memref<144x128xf32, #tpu.memory_space<vmem>>, vector<144x128xf32>
    %cst_79 = arith.constant dense<0.000000e+00> : vector<32x128xf32>
    %58 = tpu.matmul %56, %57, %cst_79 {dimension_numbers = #tpu.dot_dimension_numbers<[1], [0], [0], [1], [0, 0, 1, 1], [], []>, precision = #tpu.contract_precision<fp32>} : vector<32x144xf32>, vector<144x128xf32>, vector<32x128xf32> -> vector<32x128xf32>
    %c0_80 = arith.constant 0 : index
    %59 = memref.load %arg2[%c0_80] : memref<1xf32, #tpu.memory_space<smem>>
    %60 = vector.broadcast %59 : f32 to vector<32x128xf32>
    %61 = arith.addf %58, %60 : vector<32x128xf32>
    %c0_81 = arith.constant 0 : index
    %c0_82 = arith.constant 0 : index
    %62 = vector.load %arg3[%c0_81, %c0_82] : memref<32x128xf32, #tpu.memory_space<vmem>>, vector<32x128xf32>
    tpu.vector_store %arg3[%c0_81, %c0_82], %61 {strides = array<i32>} : memref<32x128xf32, #tpu.memory_space<vmem>>, vector<32x128xf32>,
    return
  }
}

</mosaic_0001>

<llo_original>
// kernel: tpu_custom_call.1
$region0: #{tpu_custom_call.1}
  #allocation0 [shape = 'u32[]', space=smem, size = 0x4, offset = 0x4, fixed_abs, tag = 'smem constant byte address 0x4 - core index']
  #allocation1 [shape = 'u32[144,128]{1,0:T(1,128)}', space=vmem, size = 0x12000, scoped, tag = 'internal scratch']
  #allocation2 [shape = 'f32[32,144]{1,0:T(8,128)}', space=vmem, size = 0x8000, scoped, tag = 'scratch operand']
  #allocation3 [shape = 'f32[1]{0:T(128)S(6)}', space=smem, size = 0x200, scoped, tag = 'scoped memory for tpu_custom_call.1']
  %s0 = inlined_call_operand.hbm [shape: f32[2,16,16], index: 0, kind: input, shape index: {}]
  %s1 = inlined_call_operand.hbm [shape: f32[144,128], index: 1, kind: input, shape index: {}]
  %s2 = inlined_call_operand.<no memory space> [shape: f32[1], index: 2, kind: input, shape index: {}]
  %s3 = inlined_call_operand.hbm [shape: f32[32,128], index: 3, kind: output, shape index: {}]
  %s4 = sld [smem:[#allocation0]]
  $region30: #{tpu_custom_call.1} parent=0
    _
  %s6 = ssub.s32 1, %s4
  %s7 = scalar_select 0, %s6, %s4
  %8 = sst [smem:[#allocation3]] %s2
  $region1: #{tpu_custom_call.1} parent=0
    #allocation4 [shape = 'u8[16384]{0}', space=vmem, size = 0x4000, scoped, tag = 'input window, operand 0, single buffered']
    #allocation5 [shape = 's32[1]{0}', space=sflag, size = 0x4, scoped, tag = 'scoped memory for tpu_custom_call.1']
    #allocation6 [shape = 's32[1]{0}', space=sflag, size = 0x4, scoped, tag = 'scoped memory for tpu_custom_call.1']
    #allocation7 [shape = 'u8[73728]{0}', space=vmem, size = 0x12000, scoped, tag = 'input window, operand 1, single buffered']
    #allocation8 [shape = 's32[1]{0}', space=sflag, size = 0x4, scoped, tag = 'scoped memory for tpu_custom_call.1']
    #allocation9 [shape = 'u8[16384]{0}', space=vmem, size = 0x4000, scoped, tag = 'output window, operand 0, single buffered']
    %9 = vsyncpa [#allocation5], 0
    %10 = vsyncpa [#allocation8], 0
    %11 = vsyncpa [#allocation6], 0
    // Predicated region
    $region2: #{tpu_custom_call.1} parent=1 // pred_check
      _
    $region3: #{tpu_custom_call.1} parent=1 // pred_check_branch
      %13 = sbr.rel (0) target = $region5
    $region4: #{tpu_custom_call.1} parent=1 // pred_region
      %s15 = ssub.s32 512, 512
      %16 = vsyncadd [#allocation5], %s15
      %s17 = sshll.u32 [#allocation4], 4
      %s18 = int_to_ptr.vmem [resolvable:$true] %s17
      %23 = dma.hbm_to_vmem [thread:$0]  %s0, 512, %s18, [#allocation5], 128, 128, 8
    $region5: #{tpu_custom_call.1} parent=1 // pred_fallthru
      _
    // Predicated region
    $region6: #{tpu_custom_call.1} parent=1 // pred_check
      _
    $region7: #{tpu_custom_call.1} parent=1 // pred_check_branch
      %25 = sbr.rel (0) target = $region9
    $region8: #{tpu_custom_call.1} parent=1 // pred_region
      %s27 = ssub.s32 2304, 2304
      %28 = vsyncadd [#allocation8], %s27
      %s29 = sshll.u32 [#allocation7], 4
      %s30 = int_to_ptr.vmem [resolvable:$true] %s29
      %35 = dma.hbm_to_vmem [thread:$0]  %s1, 2304, %s30, [#allocation8], 128, 128, 8
    $region9: #{tpu_custom_call.1} parent=1 // pred_fallthru
      _
    // Predicated region
    $region10: #{tpu_custom_call.1} parent=1 // pred_check
      _
    $region11: #{tpu_custom_call.1} parent=1 // pred_check_branch
      %37 = sbr.rel (0) target = $region13
    $region12: #{tpu_custom_call.1} parent=1 // pred_region
      _
    $region13: #{tpu_custom_call.1} parent=1 // pred_fallthru
      _
    // Predicated region
    $region14: #{tpu_custom_call.1} parent=1 // pred_check
      _
    $region15: #{tpu_custom_call.1} parent=1 // pred_check_branch
      %39 = sbr.rel (0) target = $region17
    $region16: #{tpu_custom_call.1} parent=1 // pred_region
      %40 = dma.done [#allocation5], 512
    $region17: #{tpu_custom_call.1} parent=1 // pred_fallthru
      _
    // Predicated region
    $region18: #{tpu_custom_call.1} parent=1 // pred_check
      _
    $region19: #{tpu_custom_call.1} parent=1 // pred_check_branch
      %42 = sbr.rel (0) target = $region21
    $region20: #{tpu_custom_call.1} parent=1 // pred_region
      %43 = dma.done [#allocation8], 2304
    $region21: #{tpu_custom_call.1} parent=1 // pred_fallthru
      _
    %44 = vst [vmem:[#allocation2] sm:$0xff] 0.0
    %vm45 = vcmask 130048
    %46 = vst.msk [vmem:[#allocation2 + $0x8] sm:$0xff] %vm45, 0.0
    %47 = vst [vmem:[#allocation2 + $0x10] sm:$0xff] 0.0
    %48 = vst.msk [vmem:[#allocation2 + $0x18] sm:$0xff] %vm45, 0.0
    %49 = vst [vmem:[#allocation2 + $0x20] sm:$0xff] 0.0
    %50 = vst.msk [vmem:[#allocation2 + $0x28] sm:$0xff] %vm45, 0.0
    %51 = vst [vmem:[#allocation2 + $0x30] sm:$0xff] 0.0
    %52 = vst.msk [vmem:[#allocation2 + $0x38] sm:$0xff] %vm45, 0.0
    %v53 = vld [vmem:[#allocation4] sm:$0xff]
    %v54 = vld [vmem:[#allocation4 + $0x8] sm:$0xf]
    %vm57 = vcmask 1043456
    %v58 = vrot.slane %v53, 4
    %v59 = vrot.slane %v54, 4
    %v60 = vsel %vm57, %v58, %v59
    %vm63 = vcmask 130052
    %64 = vst.msk [vmem:[#allocation2] sm:$0xf0] %vm63, %v58
    %65 = vst.msk [vmem:[#allocation2 + $0x10] sm:$0xff] %vm45, %v60
    %v66 = vld [vmem:[#allocation4] sm:$0xff]
    %v67 = vld [vmem:[#allocation4 + $0x8] sm:$0x1f]
    %vm70 = vcmask 1042432
    %v71 = vrot.slane %v66, 5
    %v72 = vrot.slane %v67, 5
    %v73 = vsel %vm70, %v71, %v72
    %74 = vrot.lane.b32.xlu0 %v71, 16
    %v75 = vpop.permute.xlu0 %74
    %76 = vrot.lane.b32.xlu0 %v73, 16
    %v77 = vpop.permute.xlu0 %76
    %vm80 = vcmask 261251
    %81 = vst.msk [vmem:[#allocation2] sm:$0xf8] %vm80, %v75
    %vm82 = vcmask 261248
    %83 = vst.msk [vmem:[#allocation2 + $0x10] sm:$0xff] %vm82, %v77
    %v84 = vld [vmem:[#allocation4] sm:$0xff]
    %v85 = vld [vmem:[#allocation4 + $0x8] sm:$0x3f]
    %vm88 = vcmask 1041408
    %v89 = vrot.slane %v84, 6
    %v90 = vrot.slane %v85, 6
    %v91 = vsel %vm88, %v89, %v90
    %92 = vrot.lane.b32.xlu0 %v89, 32
    %v93 = vpop.permute.xlu0 %92
    %94 = vrot.lane.b32.xlu0 %v91, 32
    %v95 = vpop.permute.xlu0 %94
    %vm98 = vcmask 392450
    %99 = vst.msk [vmem:[#allocation2] sm:$0xfc] %vm98, %v93
    %vm100 = vcmask 392448
    %101 = vst.msk [vmem:[#allocation2 + $0x10] sm:$0xff] %vm100, %v95
    %v102 = vld [vmem:[#allocation4] sm:$0xff]
    %v103 = vld [vmem:[#allocation4 + $0x8] sm:$0x7f]
    %vm106 = vcmask 1040384
    %v107 = vrot.slane %v102, 7
    %v108 = vrot.slane %v103, 7
    %v109 = vsel %vm106, %v107, %v108
    %110 = vrot.lane.b32.xlu0 %v107, 48
    %v111 = vpop.permute.xlu0 %110
    %112 = vrot.lane.b32.xlu0 %v109, 48
    %v113 = vpop.permute.xlu0 %112
    %vm116 = vcmask 523649
    %117 = vst.msk [vmem:[#allocation2] sm:$0xfe] %vm116, %v111
    %vm118 = vcmask 523648
    %119 = vst.msk [vmem:[#allocation2 + $0x10] sm:$0xff] %vm118, %v113
    %v120 = vld [vmem:[#allocation4] sm:$0xff]
    %v121 = vld [vmem:[#allocation4 + $0x8] sm:$0xff]
    %124 = vrot.lane.b32.xlu0 %v120, 64
    %v125 = vpop.permute.xlu0 %124
    %126 = vrot.lane.b32.xlu0 %v121, 64
    %v127 = vpop.permute.xlu0 %126
    %vm130 = vcmask 654848
    %131 = vst.msk [vmem:[#allocation2] sm:$0xff] %vm130, %v125
    %132 = vst.msk [vmem:[#allocation2 + $0x10] sm:$0xff] %vm130, %v127
    %v133 = vld [vmem:[#allocation4 + $0x1] sm:$0xff]
    %v134 = vld [vmem:[#allocation4 + $0x9] sm:$0x7f]
    %137 = vrot.lane.b32.xlu0 %v133, 80
    %v138 = vpop.permute.xlu0 %137
    %139 = vrot.lane.b32.xlu0 %v134, 80
    %v140 = vpop.permute.xlu0 %139
    %vm143 = vcmask 786048
    %144 = vst.msk [vmem:[#allocation2] sm:$0xff] %vm143, %v138
    %vm145 = vcmask 785024
    %146 = vst.msk [vmem:[#allocation2 + $0x10] sm:$0x7f] %vm145, %v140
    %v147 = vld [vmem:[#allocation4 + $0x2] sm:$0xff]
    %v148 = vld [vmem:[#allocation4 + $0xa] sm:$0x3f]
    %151 = vrot.lane.b32.xlu0 %v147, 96
    %v152 = vpop.permute.xlu0 %151
    %153 = vrot.lane.b32.xlu0 %v148, 96
    %v154 = vpop.permute.xlu0 %153
    %vm157 = vcmask 917248
    %158 = vst.msk [vmem:[#allocation2] sm:$0xff] %vm157, %v152
    %vm159 = vcmask 915200
    %160 = vst.msk [vmem:[#allocation2 + $0x10] sm:$0x3f] %vm159, %v154
    %v161 = vld [vmem:[#allocation4 + $0x3] sm:$0xff]
    %v162 = vld [vmem:[#allocation4 + $0xb] sm:$0x1f]
    %165 = vrot.lane.b32.xlu0 %v161, 112
    %v166 = vpop.permute.xlu0 %165
    %167 = vrot.lane.b32.xlu0 %v162, 112
    %v168 = vpop.permute.xlu0 %167
    %vm171 = vcmask 1048448
    %172 = vst.msk [vmem:[#allocation2] sm:$0xff] %vm171, %v166
    %vm173 = vcmask 1045376
    %174 = vst.msk [vmem:[#allocation2 + $0x10] sm:$0x1f] %vm173, %v168
    %v175 = vld [vmem:[#allocation4 + $0x4] sm:$0xff]
    %v176 = vld [vmem:[#allocation4 + $0xc] sm:$0xf]
    %177 = vst.msk [vmem:[#allocation2 + $0x8] sm:$0xff] %vm45, %v175
    %vm178 = vcmask 125952
    %179 = vst.msk [vmem:[#allocation2 + $0x18] sm:$0xf] %vm178, %v176
    %s180 = scalar_lea.vmem [#allocation4], 16
    %v181 = vld [vmem:[%s180] sm:$0xff]
    %v182 = vld [vmem:[%s180 + $0x8] sm:$0xf]
    %v185 = vrot.slane %v181, 4
    %v186 = vrot.slane %v182, 4
    %v187 = vsel %vm57, %v185, %v186
    %190 = vst.msk [vmem:[#allocation2 + $0x20] sm:$0xf0] %vm63, %v185
    %191 = vst.msk [vmem:[#allocation2 + $0x30] sm:$0xff] %vm45, %v187
    %v192 = vld [vmem:[%s180] sm:$0xff]
    %v193 = vld [vmem:[%s180 + $0x8] sm:$0x1f]
    %v196 = vrot.slane %v192, 5
    %v197 = vrot.slane %v193, 5
    %v198 = vsel %vm70, %v196, %v197
    %199 = vrot.lane.b32.xlu0 %v196, 16
    %v200 = vpop.permute.xlu0 %199
    %201 = vrot.lane.b32.xlu0 %v198, 16
    %v202 = vpop.permute.xlu0 %201
    %205 = vst.msk [vmem:[#allocation2 + $0x20] sm:$0xf8] %vm80, %v200
    %206 = vst.msk [vmem:[#allocation2 + $0x30] sm:$0xff] %vm82, %v202
    %v207 = vld [vmem:[%s180] sm:$0xff]
    %v208 = vld [vmem:[%s180 + $0x8] sm:$0x3f]
    %v211 = vrot.slane %v207, 6
    %v212 = vrot.slane %v208, 6
    %v213 = vsel %vm88, %v211, %v212
    %214 = vrot.lane.b32.xlu0 %v211, 32
    %v215 = vpop.permute.xlu0 %214
    %216 = vrot.lane.b32.xlu0 %v213, 32
    %v217 = vpop.permute.xlu0 %216
    %220 = vst.msk [vmem:[#allocation2 + $0x20] sm:$0xfc] %vm98, %v215
    %221 = vst.msk [vmem:[#allocation2 + $0x30] sm:$0xff] %vm100, %v217
    %v222 = vld [vmem:[%s180] sm:$0xff]
    %v223 = vld [vmem:[%s180 + $0x8] sm:$0x7f]
    %v226 = vrot.slane %v222, 7
    %v227 = vrot.slane %v223, 7
    %v228 = vsel %vm106, %v226, %v227
    %229 = vrot.lane.b32.xlu0 %v226, 48
    %v230 = vpop.permute.xlu0 %229
    %231 = vrot.lane.b32.xlu0 %v228, 48
    %v232 = vpop.permute.xlu0 %231
    %235 = vst.msk [vmem:[#allocation2 + $0x20] sm:$0xfe] %vm116, %v230
    %236 = vst.msk [vmem:[#allocation2 + $0x30] sm:$0xff] %vm118, %v232
    %v237 = vld [vmem:[%s180] sm:$0xff]
    %v238 = vld [vmem:[%s180 + $0x8] sm:$0xff]
    %241 = vrot.lane.b32.xlu0 %v237, 64
    %v242 = vpop.permute.xlu0 %241
    %243 = vrot.lane.b32.xlu0 %v238, 64
    %v244 = vpop.permute.xlu0 %243
    %247 = vst.msk [vmem:[#allocation2 + $0x20] sm:$0xff] %vm130, %v242
    %248 = vst.msk [vmem:[#allocation2 + $0x30] sm:$0xff] %vm130, %v244
    %v249 = vld [vmem:[%s180 + $0x1] sm:$0xff]
    %v250 = vld [vmem:[%s180 + $0x9] sm:$0x7f]
    %253 = vrot.lane.b32.xlu0 %v249, 80
    %v254 = vpop.permute.xlu0 %253
    %255 = vrot.lane.b32.xlu0 %v250, 80
    %v256 = vpop.permute.xlu0 %255
    %259 = vst.msk [vmem:[#allocation2 + $0x20] sm:$0xff] %vm143, %v254
    %260 = vst.msk [vmem:[#allocation2 + $0x30] sm:$0x7f] %vm145, %v256
    %v261 = vld [vmem:[%s180 + $0x2] sm:$0xff]
    %v262 = vld [vmem:[%s180 + $0xa] sm:$0x3f]
    %265 = vrot.lane.b32.xlu0 %v261, 96
    %v266 = vpop.permute.xlu0 %265
    %267 = vrot.lane.b32.xlu0 %v262, 96
    %v268 = vpop.permute.xlu0 %267
    %271 = vst.msk [vmem:[#allocation2 + $0x20] sm:$0xff] %vm157, %v266
    %272 = vst.msk [vmem:[#allocation2 + $0x30] sm:$0x3f] %vm159, %v268
    %v273 = vld [vmem:[%s180 + $0x3] sm:$0xff]
    %v274 = vld [vmem:[%s180 + $0xb] sm:$0x1f]
    %277 = vrot.lane.b32.xlu0 %v273, 112
    %v278 = vpop.permute.xlu0 %277
    %279 = vrot.lane.b32.xlu0 %v274, 112
    %v280 = vpop.permute.xlu0 %279
    %283 = vst.msk [vmem:[#allocation2 + $0x20] sm:$0xff] %vm171, %v278
    %284 = vst.msk [vmem:[#allocation2 + $0x30] sm:$0x1f] %vm173, %v280
    %v285 = vld [vmem:[%s180 + $0x4] sm:$0xff]
    %v286 = vld [vmem:[%s180 + $0xc] sm:$0xf]
    %287 = vst.msk [vmem:[#allocation2 + $0x28] sm:$0xff] %vm45, %v285
    %288 = vst.msk [vmem:[#allocation2 + $0x38] sm:$0xf] %vm178, %v286
    %v289 = vld [vmem:[#allocation2] sm:$0xff]
    %v290 = vld [vmem:[#allocation2 + $0x8] sm:$0xff]
    %v291 = vld [vmem:[#allocation2 + $0x10] sm:$0xff]
    %v292 = vld [vmem:[#allocation2 + $0x18] sm:$0xff]
    %v293 = vld [vmem:[#allocation2 + $0x20] sm:$0xff]
    %v294 = vld [vmem:[#allocation2 + $0x28] sm:$0xff]
    %v295 = vld [vmem:[#allocation2 + $0x30] sm:$0xff]
    %v296 = vld [vmem:[#allocation2 + $0x38] sm:$0xff]
    %v297 = vld [vmem:[#allocation7] sm:$0xff]
    %v298 = vld [vmem:[#allocation7 + $0x8] sm:$0xff]
    %v299 = vld [vmem:[#allocation7 + $0x10] sm:$0xff]
    %v300 = vld [vmem:[#allocation7 + $0x18] sm:$0xff]
    %v301 = vld [vmem:[#allocation7 + $0x20] sm:$0xff]
    %v302 = vld [vmem:[#allocation7 + $0x28] sm:$0xff]
    %v303 = vld [vmem:[#allocation7 + $0x30] sm:$0xff]
    %v304 = vld [vmem:[#allocation7 + $0x38] sm:$0xff]
    %v305 = vld [vmem:[#allocation7 + $0x40] sm:$0xff]
    %v306 = vld [vmem:[#allocation7 + $0x48] sm:$0xff]
    %v307 = vld [vmem:[#allocation7 + $0x50] sm:$0xff]
    %v308 = vld [vmem:[#allocation7 + $0x58] sm:$0xff]
    %v309 = vld [vmem:[#allocation7 + $0x60] sm:$0xff]
    %v310 = vld [vmem:[#allocation7 + $0x68] sm:$0xff]
    %v311 = vld [vmem:[#allocation7 + $0x70] sm:$0xff]
    %v312 = vld [vmem:[#allocation7 + $0x78] sm:$0xff]
    %v313 = vld [vmem:[#allocation7 + $0x80] sm:$0xff]
    %v314 = vld [vmem:[#allocation7 + $0x88] sm:$0xff]
    %s315 = sld [smem:[#allocation3]]
    %v316 = vstv %s315
    %v318 = vsel %vm45, %v290, 0
    %v321 = vsel %vm45, %v292, 0
    %v324 = vsel %vm45, %v294, 0
    %v327 = vsel %vm45, %v296, 0
    %329 = vmatprep.subr.mxu0 0.0
    %v330 = vand.u32 %v297, 4294901760
    %331 = vmatpush1.msra.mxu0 %v330
    %332 = vmatprep.subr.mxu0 0.0
    %v333 = vand.u32 %v298, 4294901760
    %334 = vmatpush1.msra.mxu0 %v333
    %335 = vmatprep.subr.mxu0 0.0
    %v336 = vand.u32 %v299, 4294901760
    %337 = vmatpush1.msra.mxu0 %v336
    %338 = vmatprep.subr.mxu0 0.0
    %v339 = vand.u32 %v300, 4294901760
    %340 = vmatpush1.msra.mxu0 %v339
    %341 = vmatprep.subr.mxu0 0.0
    %v342 = vand.u32 %v301, 4294901760
    %343 = vmatpush1.msra.mxu0 %v342
    %344 = vmatprep.subr.mxu0 0.0
    %v345 = vand.u32 %v302, 4294901760
    %346 = vmatpush1.msra.mxu0 %v345
    %347 = vmatprep.subr.mxu0 0.0
    %v348 = vand.u32 %v303, 4294901760
    %349 = vmatpush1.msra.mxu0 %v348
    %350 = vmatprep.subr.mxu0 0.0
    %v351 = vand.u32 %v304, 4294901760
    %352 = vmatpush1.msra.mxu0 %v351
    %353 = vmatprep.subr.mxu0 0.0
    %v354 = vand.u32 %v305, 4294901760
    %355 = vmatpush1.msra.mxu0 %v354
    %356 = vmatprep.subr.mxu0 0.0
    %v357 = vand.u32 %v306, 4294901760
    %358 = vmatpush1.msra.mxu0 %v357
    %359 = vmatprep.subr.mxu0 0.0
    %v360 = vand.u32 %v307, 4294901760
    %361 = vmatpush1.msra.mxu0 %v360
    %362 = vmatprep.subr.mxu0 0.0
    %v363 = vand.u32 %v308, 4294901760
    %364 = vmatpush1.msra.mxu0 %v363
    %365 = vmatprep.subr.mxu0 0.0
    %v366 = vand.u32 %v309, 4294901760
    %367 = vmatpush1.msra.mxu0 %v366
    %368 = vmatprep.subr.mxu0 0.0
    %v369 = vand.u32 %v310, 4294901760
    %370 = vmatpush1.msra.mxu0 %v369
    %371 = vmatprep.subr.mxu0 0.0
    %v372 = vand.u32 %v311, 4294901760
    %373 = vmatpush1.msra.mxu0 %v372
    %374 = vmatprep.subr.mxu0 0.0
    %v375 = vand.u32 %v312, 4294901760
    %376 = vmatpush1.msra.mxu0 %v375
    %377 = vmatprep.subr.mxu0 0.0
    %v378 = vand.u32 %v313, 4294901760
    %379 = vmatpush1.msra.mxu0 %v378
    %380 = vmatprep.subr.mxu0 0.0
    %v381 = vand.u32 %v314, 4294901760
    %382 = vmatpush1.msra.mxu0 %v381
    %383 = vmatprep.subr.mxu0 0.0
    %384 = vmatpush1.msra.mxu0 0.0
    %385 = vmatprep.subr.mxu0 0.0
    %386 = vmatpush1.msra.mxu0 0.0
    %387 = vmatprep.subr.mxu0 0.0
    %388 = vmatpush1.msra.mxu0 0.0
    %389 = vmatprep.subr.mxu0 0.0
    %390 = vmatpush1.msra.mxu0 0.0
    %391 = vmatprep.subr.mxu0 0.0
    %392 = vmatpush1.msra.mxu0 0.0
    %393 = vmatprep.subr.mxu0 0.0
    %394 = vmatpush1.msra.mxu0 0.0
    %395 = vmatprep.subr.mxu0 0.0
    %396 = vmatpush1.msra.mxu0 0.0
    %397 = vmatprep.subr.mxu0 0.0
    %398 = vmatpush1.msra.mxu0 0.0
    %399 = vmatprep.subr.mxu0 0.0
    %400 = vmatpush1.msra.mxu0 0.0
    %401 = vmatprep.subr.mxu0 0.0
    %402 = vmatpush1.msra.mxu0 0.0
    %403 = vmatprep.subr.mxu0 0.0
    %404 = vmatpush1.msra.mxu0 0.0
    %405 = vmatprep.subr.mxu0 0.0
    %406 = vmatpush1.msra.mxu0 0.0
    %407 = vmatprep.subr.mxu0 0.0
    %408 = vmatpush1.msra.mxu0 0.0
    %409 = vmatprep.subr.mxu0 0.0
    %410 = vmatpush1.msra.mxu0 0.0
    %v411 = vand.u32 %v318, 4294901760
    %v412 = vsub.f32 %v318, %v411
    %v413 = vand.u32 %v412, 4294901760
    %v414 = vsub.f32 %v412, %v413
    %v415 = vand.u32 %v414, 4294901760
    %416 = vmatprep.mubr.f32.mxu0 %v415
    %v417 = vand.u32 %v289, 4294901760
    %v418 = vsub.f32 %v289, %v417
    %v419 = vand.u32 %v418, 4294901760
    %v420 = vsub.f32 %v418, %v419
    %v421 = vand.u32 %v420, 4294901760
    %422 = vmatmul.mubr.f32.gmra.mrb[0].mxu0 %v421
    %v423 = vpop.f32.mrb[0].mxu0
    %v424 = vadd.f32 %v316, %v423
    %v425 = vpop.f32.mrb[0].mxu0
    %v426 = vand.u32 %v321, 4294901760
    %v427 = vsub.f32 %v321, %v426
    %v428 = vand.u32 %v427, 4294901760
    %v429 = vsub.f32 %v427, %v428
    %v430 = vand.u32 %v429, 4294901760
    %431 = vmatprep.mubr.f32.mxu0 %v430
    %v432 = vand.u32 %v291, 4294901760
    %v433 = vsub.f32 %v291, %v432
    %v434 = vand.u32 %v433, 4294901760
    %v435 = vsub.f32 %v433, %v434
    %v436 = vand.u32 %v435, 4294901760
    %437 = vmatmul.mubr.f32.gmra.mrb[0].mxu0 %v436
    %v438 = vpop.f32.mrb[0].mxu0
    %v439 = vadd.f32 %v316, %v438
    %v440 = vpop.f32.mrb[0].mxu0
    %v441 = vand.u32 %v324, 4294901760
    %v442 = vsub.f32 %v324, %v441
    %v443 = vand.u32 %v442, 4294901760
    %v444 = vsub.f32 %v442, %v443
    %v445 = vand.u32 %v444, 4294901760
    %446 = vmatprep.mubr.f32.mxu0 %v445
    %v447 = vand.u32 %v293, 4294901760
    %v448 = vsub.f32 %v293, %v447
    %v449 = vand.u32 %v448, 4294901760
    %v450 = vsub.f32 %v448, %v449
    %v451 = vand.u32 %v450, 4294901760
    %452 = vmatmul.mubr.f32.gmra.mrb[0].mxu0 %v451
    %v453 = vpop.f32.mrb[0].mxu0
    %v454 = vadd.f32 %v316, %v453
    %v455 = vpop.f32.mrb[0].mxu0
    %v456 = vand.u32 %v327, 4294901760
    %v457 = vsub.f32 %v327, %v456
    %v458 = vand.u32 %v457, 4294901760
    %v459 = vsub.f32 %v457, %v458
    %v460 = vand.u32 %v459, 4294901760
    %461 = vmatprep.mubr.f32.mxu0 %v460
    %v462 = vand.u32 %v295, 4294901760
    %v463 = vsub.f32 %v295, %v462
    %v464 = vand.u32 %v463, 4294901760
    %v465 = vsub.f32 %v463, %v464
    %v466 = vand.u32 %v465, 4294901760
    %467 = vmatmul.mubr.f32.gmra.mrb[0].mxu0 %v466
    %v468 = vpop.f32.mrb[0].mxu0
    %v469 = vadd.f32 %v316, %v468
    %v470 = vpop.f32.mrb[0].mxu0
    %471 = vdwg.mxu0
    %472 = vmatprep.subr.mxu0 0.0
    %v473 = vand.u32 %v297, 4294901760
    %v474 = vsub.f32 %v297, %v473
    %v475 = vand.u32 %v474, 4294901760
    %v476 = vsub.f32 %v474, %v475
    %v477 = vand.u32 %v476, 4294901760
    %478 = vmatpush1.msra.mxu0 %v477
    %479 = vmatprep.subr.mxu0 0.0
    %v480 = vand.u32 %v298, 4294901760
    %v481 = vsub.f32 %v298, %v480
    %v482 = vand.u32 %v481, 4294901760
    %v483 = vsub.f32 %v481, %v482
    %v484 = vand.u32 %v483, 4294901760
    %485 = vmatpush1.msra.mxu0 %v484
    %486 = vmatprep.subr.mxu0 0.0
    %v487 = vand.u32 %v299, 4294901760
    %v488 = vsub.f32 %v299, %v487
    %v489 = vand.u32 %v488, 4294901760
    %v490 = vsub.f32 %v488, %v489
    %v491 = vand.u32 %v490, 4294901760
    %492 = vmatpush1.msra.mxu0 %v491
    %493 = vmatprep.subr.mxu0 0.0
    %v494 = vand.u32 %v300, 4294901760
    %v495 = vsub.f32 %v300, %v494
    %v496 = vand.u32 %v495, 4294901760
    %v497 = vsub.f32 %v495, %v496
    %v498 = vand.u32 %v497, 4294901760
    %499 = vmatpush1.msra.mxu0 %v498
    %500 = vmatprep.subr.mxu0 0.0
    %v501 = vand.u32 %v301, 4294901760
    %v502 = vsub.f32 %v301, %v501
    %v503 = vand.u32 %v502, 4294901760
    %v504 = vsub.f32 %v502, %v503
    %v505 = vand.u32 %v504, 4294901760
    %506 = vmatpush1.msra.mxu0 %v505
    %507 = vmatprep.subr.mxu0 0.0
    %v508 = vand.u32 %v302, 4294901760
    %v509 = vsub.f32 %v302, %v508
    %v510 = vand.u32 %v509, 4294901760
    %v511 = vsub.f32 %v509, %v510
    %v512 = vand.u32 %v511, 4294901760
    %513 = vmatpush1.msra.mxu0 %v512
    %514 = vmatprep.subr.mxu0 0.0
    %v515 = vand.u32 %v303, 4294901760
    %v516 = vsub.f32 %v303, %v515
    %v517 = vand.u32 %v516, 4294901760
    %v518 = vsub.f32 %v516, %v517
    %v519 = vand.u32 %v518, 4294901760
    %520 = vmatpush1.msra.mxu0 %v519
    %521 = vmatprep.subr.mxu0 0.0
    %v522 = vand.u32 %v304, 4294901760
    %v523 = vsub.f32 %v304, %v522
    %v524 = vand.u32 %v523, 4294901760
    %v525 = vsub.f32 %v523, %v524
    %v526 = vand.u32 %v525, 4294901760
    %527 = vmatpush1.msra.mxu0 %v526
    %528 = vmatprep.subr.mxu0 0.0
    %v529 = vand.u32 %v305, 4294901760
    %v530 = vsub.f32 %v305, %v529
    %v531 = vand.u32 %v530, 4294901760
    %v532 = vsub.f32 %v530, %v531
    %v533 = vand.u32 %v532, 4294901760
    %534 = vmatpush1.msra.mxu0 %v533
    %535 = vmatprep.subr.mxu0 0.0
    %v536 = vand.u32 %v306, 4294901760
    %v537 = vsub.f32 %v306, %v536
    %v538 = vand.u32 %v537, 4294901760
    %v539 = vsub.f32 %v537, %v538
    %v540 = vand.u32 %v539, 4294901760
    %541 = vmatpush1.msra.mxu0 %v540
    %542 = vmatprep.subr.mxu0 0.0
    %v543 = vand.u32 %v307, 4294901760
    %v544 = vsub.f32 %v307, %v543
    %v545 = vand.u32 %v544, 4294901760
    %v546 = vsub.f32 %v544, %v545
    %v547 = vand.u32 %v546, 4294901760
    %548 = vmatpush1.msra.mxu0 %v547
    %549 = vmatprep.subr.mxu0 0.0
    %v550 = vand.u32 %v308, 4294901760
    %v551 = vsub.f32 %v308, %v550
    %v552 = vand.u32 %v551, 4294901760
    %v553 = vsub.f32 %v551, %v552
    %v554 = vand.u32 %v553, 4294901760
    %555 = vmatpush1.msra.mxu0 %v554
    %556 = vmatprep.subr.mxu0 0.0
    %v557 = vand.u32 %v309, 4294901760
    %v558 = vsub.f32 %v309, %v557
    %v559 = vand.u32 %v558, 4294901760
    %v560 = vsub.f32 %v558, %v559
    %v561 = vand.u32 %v560, 4294901760
    %562 = vmatpush1.msra.mxu0 %v561
    %563 = vmatprep.subr.mxu0 0.0
    %v564 = vand.u32 %v310, 4294901760
    %v565 = vsub.f32 %v310, %v564
    %v566 = vand.u32 %v565, 4294901760
    %v567 = vsub.f32 %v565, %v566
    %v568 = vand.u32 %v567, 4294901760
    %569 = vmatpush1.msra.mxu0 %v568
    %570 = vmatprep.subr.mxu0 0.0
    %v571 = vand.u32 %v311, 4294901760
    %v572 = vsub.f32 %v311, %v571
    %v573 = vand.u32 %v572, 4294901760
    %v574 = vsub.f32 %v572, %v573
    %v575 = vand.u32 %v574, 4294901760
    %576 = vmatpush1.msra.mxu0 %v575
    %577 = vmatprep.subr.mxu0 0.0
    %v578 = vand.u32 %v312, 4294901760
    %v579 = vsub.f32 %v312, %v578
    %v580 = vand.u32 %v579, 4294901760
    %v581 = vsub.f32 %v579, %v580
    %v582 = vand.u32 %v581, 4294901760
    %583 = vmatpush1.msra.mxu0 %v582
    %584 = vmatprep.subr.mxu0 0.0
    %v585 = vand.u32 %v313, 4294901760
    %v586 = vsub.f32 %v313, %v585
    %v587 = vand.u32 %v586, 4294901760
    %v588 = vsub.f32 %v586, %v587
    %v589 = vand.u32 %v588, 4294901760
    %590 = vmatpush1.msra.mxu0 %v589
    %591 = vmatprep.subr.mxu0 0.0
    %v592 = vand.u32 %v314, 4294901760
    %v593 = vsub.f32 %v314, %v592
    %v594 = vand.u32 %v593, 4294901760
    %v595 = vsub.f32 %v593, %v594
    %v596 = vand.u32 %v595, 4294901760
    %597 = vmatpush1.msra.mxu0 %v596
    %598 = vmatprep.subr.mxu0 0.0
    %599 = vmatpush1.msra.mxu0 0.0
    %600 = vmatprep.subr.mxu0 0.0
    %601 = vmatpush1.msra.mxu0 0.0
    %602 = vmatprep.subr.mxu0 0.0
    %603 = vmatpush1.msra.mxu0 0.0
    %604 = vmatprep.subr.mxu0 0.0
    %605 = vmatpush1.msra.mxu0 0.0
    %606 = vmatprep.subr.mxu0 0.0
    %607 = vmatpush1.msra.mxu0 0.0
    %608 = vmatprep.subr.mxu0 0.0
    %609 = vmatpush1.msra.mxu0 0.0
    %610 = vmatprep.subr.mxu0 0.0
    %611 = vmatpush1.msra.mxu0 0.0
    %612 = vmatprep.subr.mxu0 0.0
    %613 = vmatpush1.msra.mxu0 0.0
    %614 = vmatprep.subr.mxu0 0.0
    %615 = vmatpush1.msra.mxu0 0.0
    %616 = vmatprep.subr.mxu0 0.0
    %617 = vmatpush1.msra.mxu0 0.0
    %618 = vmatprep.subr.mxu0 0.0
    %619 = vmatpush1.msra.mxu0 0.0
    %620 = vmatprep.subr.mxu0 0.0
    %621 = vmatpush1.msra.mxu0 0.0
    %622 = vmatprep.subr.mxu0 0.0
    %623 = vmatpush1.msra.mxu0 0.0
    %624 = vmatprep.subr.mxu0 0.0
    %625 = vmatpush1.msra.mxu0 0.0
    %v626 = vand.u32 %v318, 4294901760
    %627 = vmatprep.mubr.f32.mxu0 %v626
    %v628 = vand.u32 %v289, 4294901760
    %629 = vmatmul.mubr.f32.gmra.mrb[0].mxu0 %v628
    %v630 = vpop.f32.mrb[0].mxu0
    %v631 = vadd.f32 %v424, %v630
    %v632 = vpop.f32.mrb[0].mxu0
    %v633 = vand.u32 %v321, 4294901760
    %634 = vmatprep.mubr.f32.mxu0 %v633
    %v635 = vand.u32 %v291, 4294901760
    %636 = vmatmul.mubr.f32.gmra.mrb[0].mxu0 %v635
    %v637 = vpop.f32.mrb[0].mxu0
    %v638 = vadd.f32 %v439, %v637
    %v639 = vpop.f32.mrb[0].mxu0
    %v640 = vand.u32 %v324, 4294901760
    %641 = vmatprep.mubr.f32.mxu0 %v640
    %v642 = vand.u32 %v293, 4294901760
    %643 = vmatmul.mubr.f32.gmra.mrb[0].mxu0 %v642
    %v644 = vpop.f32.mrb[0].mxu0
    %v645 = vadd.f32 %v454, %v644
    %v646 = vpop.f32.mrb[0].mxu0
    %v647 = vand.u32 %v327, 4294901760
    %648 = vmatprep.mubr.f32.mxu0 %v647
    %v649 = vand.u32 %v295, 4294901760
    %650 = vmatmul.mubr.f32.gmra.mrb[0].mxu0 %v649
    %v651 = vpop.f32.mrb[0].mxu0
    %v652 = vadd.f32 %v469, %v651
    %v653 = vpop.f32.mrb[0].mxu0
    %654 = vdwg.mxu0
    %655 = vmatprep.subr.mxu0 0.0
    %v656 = vand.u32 %v297, 4294901760
    %v657 = vsub.f32 %v297, %v656
    %658 = vmatpush1.msra.mxu0 %v657
    %659 = vmatprep.subr.mxu0 0.0
    %v660 = vand.u32 %v298, 4294901760
    %v661 = vsub.f32 %v298, %v660
    %662 = vmatpush1.msra.mxu0 %v661
    %663 = vmatprep.subr.mxu0 0.0
    %v664 = vand.u32 %v299, 4294901760
    %v665 = vsub.f32 %v299, %v664
    %666 = vmatpush1.msra.mxu0 %v665
    %667 = vmatprep.subr.mxu0 0.0
    %v668 = vand.u32 %v300, 4294901760
    %v669 = vsub.f32 %v300, %v668
    %670 = vmatpush1.msra.mxu0 %v669
    %671 = vmatprep.subr.mxu0 0.0
    %v672 = vand.u32 %v301, 4294901760
    %v673 = vsub.f32 %v301, %v672
    %674 = vmatpush1.msra.mxu0 %v673
    %675 = vmatprep.subr.mxu0 0.0
    %v676 = vand.u32 %v302, 4294901760
    %v677 = vsub.f32 %v302, %v676
    %678 = vmatpush1.msra.mxu0 %v677
    %679 = vmatprep.subr.mxu0 0.0
    %v680 = vand.u32 %v303, 4294901760
    %v681 = vsub.f32 %v303, %v680
    %682 = vmatpush1.msra.mxu0 %v681
    %683 = vmatprep.subr.mxu0 0.0
    %v684 = vand.u32 %v304, 4294901760
    %v685 = vsub.f32 %v304, %v684
    %686 = vmatpush1.msra.mxu0 %v685
    %687 = vmatprep.subr.mxu0 0.0
    %v688 = vand.u32 %v305, 4294901760
    %v689 = vsub.f32 %v305, %v688
    %690 = vmatpush1.msra.mxu0 %v689
    %691 = vmatprep.subr.mxu0 0.0
    %v692 = vand.u32 %v306, 4294901760
    %v693 = vsub.f32 %v306, %v692
    %694 = vmatpush1.msra.mxu0 %v693
    %695 = vmatprep.subr.mxu0 0.0
    %v696 = vand.u32 %v307, 4294901760
    %v697 = vsub.f32 %v307, %v696
    %698 = vmatpush1.msra.mxu0 %v697
    %699 = vmatprep.subr.mxu0 0.0
    %v700 = vand.u32 %v308, 4294901760
    %v701 = vsub.f32 %v308, %v700
    %702 = vmatpush1.msra.mxu0 %v701
    %703 = vmatprep.subr.mxu0 0.0
    %v704 = vand.u32 %v309, 4294901760
    %v705 = vsub.f32 %v309, %v704
    %706 = vmatpush1.msra.mxu0 %v705
    %707 = vmatprep.subr.mxu0 0.0
    %v708 = vand.u32 %v310, 4294901760
    %v709 = vsub.f32 %v310, %v708
    %710 = vmatpush1.msra.mxu0 %v709
    %711 = vmatprep.subr.mxu0 0.0
    %v712 = vand.u32 %v311, 4294901760
    %v713 = vsub.f32 %v311, %v712
    %714 = vmatpush1.msra.mxu0 %v713
    %715 = vmatprep.subr.mxu0 0.0
    %v716 = vand.u32 %v312, 4294901760
    %v717 = vsub.f32 %v312, %v716
    %718 = vmatpush1.msra.mxu0 %v717
    %719 = vmatprep.subr.mxu0 0.0
    %v720 = vand.u32 %v313, 4294901760
    %v721 = vsub.f32 %v313, %v720
    %722 = vmatpush1.msra.mxu0 %v721
    %723 = vmatprep.subr.mxu0 0.0
    %v724 = vand.u32 %v314, 4294901760
    %v725 = vsub.f32 %v314, %v724
    %726 = vmatpush1.msra.mxu0 %v725
    %727 = vmatprep.subr.mxu0 0.0
    %728 = vmatpush1.msra.mxu0 0.0
    %729 = vmatprep.subr.mxu0 0.0
    %730 = vmatpush1.msra.mxu0 0.0
    %731 = vmatprep.subr.mxu0 0.0
    %732 = vmatpush1.msra.mxu0 0.0
    %733 = vmatprep.subr.mxu0 0.0
    %734 = vmatpush1.msra.mxu0 0.0
    %735 = vmatprep.subr.mxu0 0.0
    %736 = vmatpush1.msra.mxu0 0.0
    %737 = vmatprep.subr.mxu0 0.0
    %738 = vmatpush1.msra.mxu0 0.0
    %739 = vmatprep.subr.mxu0 0.0
    %740 = vmatpush1.msra.mxu0 0.0
    %741 = vmatprep.subr.mxu0 0.0
    %742 = vmatpush1.msra.mxu0 0.0
    %743 = vmatprep.subr.mxu0 0.0
    %744 = vmatpush1.msra.mxu0 0.0
    %745 = vmatprep.subr.mxu0 0.0
    %746 = vmatpush1.msra.mxu0 0.0
    %747 = vmatprep.subr.mxu0 0.0
    %748 = vmatpush1.msra.mxu0 0.0
    %749 = vmatprep.subr.mxu0 0.0
    %750 = vmatpush1.msra.mxu0 0.0
    %751 = vmatprep.subr.mxu0 0.0
    %752 = vmatpush1.msra.mxu0 0.0
    %753 = vmatprep.subr.mxu0 0.0
    %754 = vmatpush1.msra.mxu0 0.0
    %v755 = vand.u32 %v318, 4294901760
    %v756 = vsub.f32 %v318, %v755
    %757 = vmatprep.mubr.f32.mxu0 %v756
    %v758 = vand.u32 %v289, 4294901760
    %v759 = vsub.f32 %v289, %v758
    %760 = vmatmul.mubr.f32.gmra.mrb[0].mxu0 %v759
    %v761 = vpop.f32.mrb[0].mxu0
    %v762 = vadd.f32 %v631, %v761
    %v763 = vpop.f32.mrb[0].mxu0
    %v764 = vand.u32 %v321, 4294901760
    %v765 = vsub.f32 %v321, %v764
    %766 = vmatprep.mubr.f32.mxu0 %v765
    %v767 = vand.u32 %v291, 4294901760
    %v768 = vsub.f32 %v291, %v767
    %769 = vmatmul.mubr.f32.gmra.mrb[0].mxu0 %v768
    %v770 = vpop.f32.mrb[0].mxu0
    %v771 = vadd.f32 %v638, %v770
    %v772 = vpop.f32.mrb[0].mxu0
    %v773 = vand.u32 %v324, 4294901760
    %v774 = vsub.f32 %v324, %v773
    %775 = vmatprep.mubr.f32.mxu0 %v774
    %v776 = vand.u32 %v293, 4294901760
    %v777 = vsub.f32 %v293, %v776
    %778 = vmatmul.mubr.f32.gmra.mrb[0].mxu0 %v777
    %v779 = vpop.f32.mrb[0].mxu0
    %v780 = vadd.f32 %v645, %v779
    %v781 = vpop.f32.mrb[0].mxu0
    %v782 = vand.u32 %v327, 4294901760
    %v783 = vsub.f32 %v327, %v782
    %784 = vmatprep.mubr.f32.mxu0 %v783
    %v785 = vand.u32 %v295, 4294901760
    %v786 = vsub.f32 %v295, %v785
    %787 = vmatmul.mubr.f32.gmra.mrb[0].mxu0 %v786
    %v788 = vpop.f32.mrb[0].mxu0
    %v789 = vadd.f32 %v652, %v788
    %v790 = vpop.f32.mrb[0].mxu0
    %791 = vdwg.mxu0
    %792 = vmatprep.subr.mxu0 0.0
    %v793 = vand.u32 %v297, 4294901760
    %794 = vmatpush1.msra.mxu0 %v793
    %795 = vmatprep.subr.mxu0 0.0
    %v796 = vand.u32 %v298, 4294901760
    %797 = vmatpush1.msra.mxu0 %v796
    %798 = vmatprep.subr.mxu0 0.0
    %v799 = vand.u32 %v299, 4294901760
    %800 = vmatpush1.msra.mxu0 %v799
    %801 = vmatprep.subr.mxu0 0.0
    %v802 = vand.u32 %v300, 4294901760
    %803 = vmatpush1.msra.mxu0 %v802
    %804 = vmatprep.subr.mxu0 0.0
    %v805 = vand.u32 %v301, 4294901760
    %806 = vmatpush1.msra.mxu0 %v805
    %807 = vmatprep.subr.mxu0 0.0
    %v808 = vand.u32 %v302, 4294901760
    %809 = vmatpush1.msra.mxu0 %v808
    %810 = vmatprep.subr.mxu0 0.0
    %v811 = vand.u32 %v303, 4294901760
    %812 = vmatpush1.msra.mxu0 %v811
    %813 = vmatprep.subr.mxu0 0.0
    %v814 = vand.u32 %v304, 4294901760
    %815 = vmatpush1.msra.mxu0 %v814
    %816 = vmatprep.subr.mxu0 0.0
    %v817 = vand.u32 %v305, 4294901760
    %818 = vmatpush1.msra.mxu0 %v817
    %819 = vmatprep.subr.mxu0 0.0
    %v820 = vand.u32 %v306, 4294901760
    %821 = vmatpush1.msra.mxu0 %v820
    %822 = vmatprep.subr.mxu0 0.0
    %v823 = vand.u32 %v307, 4294901760
    %824 = vmatpush1.msra.mxu0 %v823
    %825 = vmatprep.subr.mxu0 0.0
    %v826 = vand.u32 %v308, 4294901760
    %827 = vmatpush1.msra.mxu0 %v826
    %828 = vmatprep.subr.mxu0 0.0
    %v829 = vand.u32 %v309, 4294901760
    %830 = vmatpush1.msra.mxu0 %v829
    %831 = vmatprep.subr.mxu0 0.0
    %v832 = vand.u32 %v310, 4294901760
    %833 = vmatpush1.msra.mxu0 %v832
    %834 = vmatprep.subr.mxu0 0.0
    %v835 = vand.u32 %v311, 4294901760
    %836 = vmatpush1.msra.mxu0 %v835
    %837 = vmatprep.subr.mxu0 0.0
    %v838 = vand.u32 %v312, 4294901760
    %839 = vmatpush1.msra.mxu0 %v838
    %840 = vmatprep.subr.mxu0 0.0
    %v841 = vand.u32 %v313, 4294901760
    %842 = vmatpush1.msra.mxu0 %v841
    %843 = vmatprep.subr.mxu0 0.0
    %v844 = vand.u32 %v314, 4294901760
    %845 = vmatpush1.msra.mxu0 %v844
    %846 = vmatprep.subr.mxu0 0.0
    %847 = vmatpush1.msra.mxu0 0.0
    %848 = vmatprep.subr.mxu0 0.0
    %849 = vmatpush1.msra.mxu0 0.0
    %850 = vmatprep.subr.mxu0 0.0
    %851 = vmatpush1.msra.mxu0 0.0
    %852 = vmatprep.subr.mxu0 0.0
    %853 = vmatpush1.msra.mxu0 0.0
    %854 = vmatprep.subr.mxu0 0.0
    %855 = vmatpush1.msra.mxu0 0.0
    %856 = vmatprep.subr.mxu0 0.0
    %857 = vmatpush1.msra.mxu0 0.0
    %858 = vmatprep.subr.mxu0 0.0
    %859 = vmatpush1.msra.mxu0 0.0
    %860 = vmatprep.subr.mxu0 0.0
    %861 = vmatpush1.msra.mxu0 0.0
    %862 = vmatprep.subr.mxu0 0.0
    %863 = vmatpush1.msra.mxu0 0.0
    %864 = vmatprep.subr.mxu0 0.0
    %865 = vmatpush1.msra.mxu0 0.0
    %866 = vmatprep.subr.mxu0 0.0
    %867 = vmatpush1.msra.mxu0 0.0
    %868 = vmatprep.subr.mxu0 0.0
    %869 = vmatpush1.msra.mxu0 0.0
    %870 = vmatprep.subr.mxu0 0.0
    %871 = vmatpush1.msra.mxu0 0.0
    %872 = vmatprep.subr.mxu0 0.0
    %873 = vmatpush1.msra.mxu0 0.0
    %v874 = vand.u32 %v318, 4294901760
    %v875 = vsub.f32 %v318, %v874
    %v876 = vand.u32 %v875, 4294901760
    %877 = vmatprep.mubr.f32.mxu0 %v876
    %v878 = vand.u32 %v289, 4294901760
    %v879 = vsub.f32 %v289, %v878
    %v880 = vand.u32 %v879, 4294901760
    %881 = vmatmul.mubr.f32.gmra.mrb[0].mxu0 %v880
    %v882 = vpop.f32.mrb[0].mxu0
    %v883 = vadd.f32 %v762, %v882
    %v884 = vpop.f32.mrb[0].mxu0
    %v885 = vand.u32 %v321, 4294901760
    %v886 = vsub.f32 %v321, %v885
    %v887 = vand.u32 %v886, 4294901760
    %888 = vmatprep.mubr.f32.mxu0 %v887
    %v889 = vand.u32 %v291, 4294901760
    %v890 = vsub.f32 %v291, %v889
    %v891 = vand.u32 %v890, 4294901760
    %892 = vmatmul.mubr.f32.gmra.mrb[0].mxu0 %v891
    %v893 = vpop.f32.mrb[0].mxu0
    %v894 = vadd.f32 %v771, %v893
    %v895 = vpop.f32.mrb[0].mxu0
    %v896 = vand.u32 %v324, 4294901760
    %v897 = vsub.f32 %v324, %v896
    %v898 = vand.u32 %v897, 4294901760
    %899 = vmatprep.mubr.f32.mxu0 %v898
    %v900 = vand.u32 %v293, 4294901760
    %v901 = vsub.f32 %v293, %v900
    %v902 = vand.u32 %v901, 4294901760
    %903 = vmatmul.mubr.f32.gmra.mrb[0].mxu0 %v902
    %v904 = vpop.f32.mrb[0].mxu0
    %v905 = vadd.f32 %v780, %v904
    %v906 = vpop.f32.mrb[0].mxu0
    %v907 = vand.u32 %v327, 4294901760
    %v908 = vsub.f32 %v327, %v907
    %v909 = vand.u32 %v908, 4294901760
    %910 = vmatprep.mubr.f32.mxu0 %v909
    %v911 = vand.u32 %v295, 4294901760
    %v912 = vsub.f32 %v295, %v911
    %v913 = vand.u32 %v912, 4294901760
    %914 = vmatmul.mubr.f32.gmra.mrb[0].mxu0 %v913
    %v915 = vpop.f32.mrb[0].mxu0
    %v916 = vadd.f32 %v789, %v915
    %v917 = vpop.f32.mrb[0].mxu0
    %918 = vdwg.mxu0
    %919 = vmatprep.subr.mxu0 0.0
    %v920 = vand.u32 %v297, 4294901760
    %v921 = vsub.f32 %v297, %v920
    %v922 = vand.u32 %v921, 4294901760
    %923 = vmatpush1.msra.mxu0 %v922
    %924 = vmatprep.subr.mxu0 0.0
    %v925 = vand.u32 %v298, 4294901760
    %v926 = vsub.f32 %v298, %v925
    %v927 = vand.u32 %v926, 4294901760
    %928 = vmatpush1.msra.mxu0 %v927
    %929 = vmatprep.subr.mxu0 0.0
    %v930 = vand.u32 %v299, 4294901760
    %v931 = vsub.f32 %v299, %v930
    %v932 = vand.u32 %v931, 4294901760
    %933 = vmatpush1.msra.mxu0 %v932
    %934 = vmatprep.subr.mxu0 0.0
    %v935 = vand.u32 %v300, 4294901760
    %v936 = vsub.f32 %v300, %v935
    %v937 = vand.u32 %v936, 4294901760
    %938 = vmatpush1.msra.mxu0 %v937
    %939 = vmatprep.subr.mxu0 0.0
    %v940 = vand.u32 %v301, 4294901760
    %v941 = vsub.f32 %v301, %v940
    %v942 = vand.u32 %v941, 4294901760
    %943 = vmatpush1.msra.mxu0 %v942
    %944 = vmatprep.subr.mxu0 0.0
    %v945 = vand.u32 %v302, 4294901760
    %v946 = vsub.f32 %v302, %v945
    %v947 = vand.u32 %v946, 4294901760
    %948 = vmatpush1.msra.mxu0 %v947
    %949 = vmatprep.subr.mxu0 0.0
    %v950 = vand.u32 %v303, 4294901760
    %v951 = vsub.f32 %v303, %v950
    %v952 = vand.u32 %v951, 4294901760
    %953 = vmatpush1.msra.mxu0 %v952
    %954 = vmatprep.subr.mxu0 0.0
    %v955 = vand.u32 %v304, 4294901760
    %v956 = vsub.f32 %v304, %v955
    %v957 = vand.u32 %v956, 4294901760
    %958 = vmatpush1.msra.mxu0 %v957
    %959 = vmatprep.subr.mxu0 0.0
    %v960 = vand.u32 %v305, 4294901760
    %v961 = vsub.f32 %v305, %v960
    %v962 = vand.u32 %v961, 4294901760
    %963 = vmatpush1.msra.mxu0 %v962
    %964 = vmatprep.subr.mxu0 0.0
    %v965 = vand.u32 %v306, 4294901760
    %v966 = vsub.f32 %v306, %v965
    %v967 = vand.u32 %v966, 4294901760
    %968 = vmatpush1.msra.mxu0 %v967
    %969 = vmatprep.subr.mxu0 0.0
    %v970 = vand.u32 %v307, 4294901760
    %v971 = vsub.f32 %v307, %v970
    %v972 = vand.u32 %v971, 4294901760
    %973 = vmatpush1.msra.mxu0 %v972
    %974 = vmatprep.subr.mxu0 0.0
    %v975 = vand.u32 %v308, 4294901760
    %v976 = vsub.f32 %v308, %v975
    %v977 = vand.u32 %v976, 4294901760
    %978 = vmatpush1.msra.mxu0 %v977
    %979 = vmatprep.subr.mxu0 0.0
    %v980 = vand.u32 %v309, 4294901760
    %v981 = vsub.f32 %v309, %v980
    %v982 = vand.u32 %v981, 4294901760
    %983 = vmatpush1.msra.mxu0 %v982
    %984 = vmatprep.subr.mxu0 0.0
    %v985 = vand.u32 %v310, 4294901760
    %v986 = vsub.f32 %v310, %v985
    %v987 = vand.u32 %v986, 4294901760
    %988 = vmatpush1.msra.mxu0 %v987
    %989 = vmatprep.subr.mxu0 0.0
    %v990 = vand.u32 %v311, 4294901760
    %v991 = vsub.f32 %v311, %v990
    %v992 = vand.u32 %v991, 4294901760
    %993 = vmatpush1.msra.mxu0 %v992
    %994 = vmatprep.subr.mxu0 0.0
    %v995 = vand.u32 %v312, 4294901760
    %v996 = vsub.f32 %v312, %v995
    %v997 = vand.u32 %v996, 4294901760
    %998 = vmatpush1.msra.mxu0 %v997
    %999 = vmatprep.subr.mxu0 0.0
    %v1000 = vand.u32 %v313, 4294901760
    %v1001 = vsub.f32 %v313, %v1000
    %v1002 = vand.u32 %v1001, 4294901760
    %1003 = vmatpush1.msra.mxu0 %v1002
    %1004 = vmatprep.subr.mxu0 0.0
    %v1005 = vand.u32 %v314, 4294901760
    %v1006 = vsub.f32 %v314, %v1005
    %v1007 = vand.u32 %v1006, 4294901760
    %1008 = vmatpush1.msra.mxu0 %v1007
    %1009 = vmatprep.subr.mxu0 0.0
    %1010 = vmatpush1.msra.mxu0 0.0
    %1011 = vmatprep.subr.mxu0 0.0
    %1012 = vmatpush1.msra.mxu0 0.0
    %1013 = vmatprep.subr.mxu0 0.0
    %1014 = vmatpush1.msra.mxu0 0.0
    %1015 = vmatprep.subr.mxu0 0.0
    %1016 = vmatpush1.msra.mxu0 0.0
    %1017 = vmatprep.subr.mxu0 0.0
    %1018 = vmatpush1.msra.mxu0 0.0
    %1019 = vmatprep.subr.mxu0 0.0
    %1020 = vmatpush1.msra.mxu0 0.0
    %1021 = vmatprep.subr.mxu0 0.0
    %1022 = vmatpush1.msra.mxu0 0.0
    %1023 = vmatprep.subr.mxu0 0.0
    %1024 = vmatpush1.msra.mxu0 0.0
    %1025 = vmatprep.subr.mxu0 0.0
    %1026 = vmatpush1.msra.mxu0 0.0
    %1027 = vmatprep.subr.mxu0 0.0
    %1028 = vmatpush1.msra.mxu0 0.0
    %1029 = vmatprep.subr.mxu0 0.0
    %1030 = vmatpush1.msra.mxu0 0.0
    %1031 = vmatprep.subr.mxu0 0.0
    %1032 = vmatpush1.msra.mxu0 0.0
    %1033 = vmatprep.subr.mxu0 0.0
    %1034 = vmatpush1.msra.mxu0 0.0
    %1035 = vmatprep.subr.mxu0 0.0
    %1036 = vmatpush1.msra.mxu0 0.0
    %v1037 = vand.u32 %v318, 4294901760
    %1038 = vmatprep.mubr.f32.mxu0 %v1037
    %v1039 = vand.u32 %v289, 4294901760
    %1040 = vmatmul.mubr.f32.gmra.mrb[0].mxu0 %v1039
    %v1041 = vpop.f32.mrb[0].mxu0
    %v1042 = vadd.f32 %v883, %v1041
    %v1043 = vpop.f32.mrb[0].mxu0
    %v1044 = vand.u32 %v321, 4294901760
    %1045 = vmatprep.mubr.f32.mxu0 %v1044
    %v1046 = vand.u32 %v291, 4294901760
    %1047 = vmatmul.mubr.f32.gmra.mrb[0].mxu0 %v1046
    %v1048 = vpop.f32.mrb[0].mxu0
    %v1049 = vadd.f32 %v894, %v1048
    %v1050 = vpop.f32.mrb[0].mxu0
    %v1051 = vand.u32 %v324, 4294901760
    %1052 = vmatprep.mubr.f32.mxu0 %v1051
    %v1053 = vand.u32 %v293, 4294901760
    %1054 = vmatmul.mubr.f32.gmra.mrb[0].mxu0 %v1053
    %v1055 = vpop.f32.mrb[0].mxu0
    %v1056 = vadd.f32 %v905, %v1055
    %v1057 = vpop.f32.mrb[0].mxu0
    %v1058 = vand.u32 %v327, 4294901760
    %1059 = vmatprep.mubr.f32.mxu0 %v1058
    %v1060 = vand.u32 %v295, 4294901760
    %1061 = vmatmul.mubr.f32.gmra.mrb[0].mxu0 %v1060
    %v1062 = vpop.f32.mrb[0].mxu0
    %v1063 = vadd.f32 %v916, %v1062
    %v1064 = vpop.f32.mrb[0].mxu0
    %1065 = vdwg.mxu0
    %1066 = vmatprep.subr.mxu0 0.0
    %v1067 = vand.u32 %v297, 4294901760
    %1068 = vmatpush1.msra.mxu0 %v1067
    %1069 = vmatprep.subr.mxu0 0.0
    %v1070 = vand.u32 %v298, 4294901760
    %1071 = vmatpush1.msra.mxu0 %v1070
    %1072 = vmatprep.subr.mxu0 0.0
    %v1073 = vand.u32 %v299, 4294901760
    %1074 = vmatpush1.msra.mxu0 %v1073
    %1075 = vmatprep.subr.mxu0 0.0
    %v1076 = vand.u32 %v300, 4294901760
    %1077 = vmatpush1.msra.mxu0 %v1076
    %1078 = vmatprep.subr.mxu0 0.0
    %v1079 = vand.u32 %v301, 4294901760
    %1080 = vmatpush1.msra.mxu0 %v1079
    %1081 = vmatprep.subr.mxu0 0.0
    %v1082 = vand.u32 %v302, 4294901760
    %1083 = vmatpush1.msra.mxu0 %v1082
    %1084 = vmatprep.subr.mxu0 0.0
    %v1085 = vand.u32 %v303, 4294901760
    %1086 = vmatpush1.msra.mxu0 %v1085
    %1087 = vmatprep.subr.mxu0 0.0
    %v1088 = vand.u32 %v304, 4294901760
    %1089 = vmatpush1.msra.mxu0 %v1088
    %1090 = vmatprep.subr.mxu0 0.0
    %v1091 = vand.u32 %v305, 4294901760
    %1092 = vmatpush1.msra.mxu0 %v1091
    %1093 = vmatprep.subr.mxu0 0.0
    %v1094 = vand.u32 %v306, 4294901760
    %1095 = vmatpush1.msra.mxu0 %v1094
    %1096 = vmatprep.subr.mxu0 0.0
    %v1097 = vand.u32 %v307, 4294901760
    %1098 = vmatpush1.msra.mxu0 %v1097
    %1099 = vmatprep.subr.mxu0 0.0
    %v1100 = vand.u32 %v308, 4294901760
    %1101 = vmatpush1.msra.mxu0 %v1100
    %1102 = vmatprep.subr.mxu0 0.0
    %v1103 = vand.u32 %v309, 4294901760
    %1104 = vmatpush1.msra.mxu0 %v1103
    %1105 = vmatprep.subr.mxu0 0.0
    %v1106 = vand.u32 %v310, 4294901760
    %1107 = vmatpush1.msra.mxu0 %v1106
    %1108 = vmatprep.subr.mxu0 0.0
    %v1109 = vand.u32 %v311, 4294901760
    %1110 = vmatpush1.msra.mxu0 %v1109
    %1111 = vmatprep.subr.mxu0 0.0
    %v1112 = vand.u32 %v312, 4294901760
    %1113 = vmatpush1.msra.mxu0 %v1112
    %1114 = vmatprep.subr.mxu0 0.0
    %v1115 = vand.u32 %v313, 4294901760
    %1116 = vmatpush1.msra.mxu0 %v1115
    %1117 = vmatprep.subr.mxu0 0.0
    %v1118 = vand.u32 %v314, 4294901760
    %1119 = vmatpush1.msra.mxu0 %v1118
    %1120 = vmatprep.subr.mxu0 0.0
    %1121 = vmatpush1.msra.mxu0 0.0
    %1122 = vmatprep.subr.mxu0 0.0
    %1123 = vmatpush1.msra.mxu0 0.0
    %1124 = vmatprep.subr.mxu0 0.0
    %1125 = vmatpush1.msra.mxu0 0.0
    %1126 = vmatprep.subr.mxu0 0.0
    %1127 = vmatpush1.msra.mxu0 0.0
    %1128 = vmatprep.subr.mxu0 0.0
    %1129 = vmatpush1.msra.mxu0 0.0
    %1130 = vmatprep.subr.mxu0 0.0
    %1131 = vmatpush1.msra.mxu0 0.0
    %1132 = vmatprep.subr.mxu0 0.0
    %1133 = vmatpush1.msra.mxu0 0.0
    %1134 = vmatprep.subr.mxu0 0.0
    %1135 = vmatpush1.msra.mxu0 0.0
    %1136 = vmatprep.subr.mxu0 0.0
    %1137 = vmatpush1.msra.mxu0 0.0
    %1138 = vmatprep.subr.mxu0 0.0
    %1139 = vmatpush1.msra.mxu0 0.0
    %1140 = vmatprep.subr.mxu0 0.0
    %1141 = vmatpush1.msra.mxu0 0.0
    %1142 = vmatprep.subr.mxu0 0.0
    %1143 = vmatpush1.msra.mxu0 0.0
    %1144 = vmatprep.subr.mxu0 0.0
    %1145 = vmatpush1.msra.mxu0 0.0
    %1146 = vmatprep.subr.mxu0 0.0
    %1147 = vmatpush1.msra.mxu0 0.0
    %v1148 = vand.u32 %v318, 4294901760
    %1149 = vmatprep.mubr.f32.mxu0 %v1148
    %v1150 = vand.u32 %v289, 4294901760
    %1151 = vmatmul.mubr.f32.gmra.mrb[0].mxu0 %v1150
    %v1152 = vpop.f32.mrb[0].mxu0
    %v1153 = vadd.f32 %v1042, %v1152
    %v1154 = vpop.f32.mrb[0].mxu0
    %v1155 = vand.u32 %v321, 4294901760
    %1156 = vmatprep.mubr.f32.mxu0 %v1155
    %v1157 = vand.u32 %v291, 4294901760
    %1158 = vmatmul.mubr.f32.gmra.mrb[0].mxu0 %v1157
    %v1159 = vpop.f32.mrb[0].mxu0
    %v1160 = vadd.f32 %v1049, %v1159
    %v1161 = vpop.f32.mrb[0].mxu0
    %v1162 = vand.u32 %v324, 4294901760
    %1163 = vmatprep.mubr.f32.mxu0 %v1162
    %v1164 = vand.u32 %v293, 4294901760
    %1165 = vmatmul.mubr.f32.gmra.mrb[0].mxu0 %v1164
    %v1166 = vpop.f32.mrb[0].mxu0
    %v1167 = vadd.f32 %v1056, %v1166
    %v1168 = vpop.f32.mrb[0].mxu0
    %v1169 = vand.u32 %v327, 4294901760
    %1170 = vmatprep.mubr.f32.mxu0 %v1169
    %v1171 = vand.u32 %v295, 4294901760
    %1172 = vmatmul.mubr.f32.gmra.mrb[0].mxu0 %v1171
    %v1173 = vpop.f32.mrb[0].mxu0
    %v1174 = vadd.f32 %v1063, %v1173
    %v1175 = vpop.f32.mrb[0].mxu0
    %1176 = vdwg.mxu0
    %1177 = vst [vmem:[#allocation9] sm:$0xff] %v1153
    %1178 = vst [vmem:[#allocation9 + $0x8] sm:$0xff] %v1160
    %1179 = vst [vmem:[#allocation9 + $0x10] sm:$0xff] %v1167
    %1180 = vst [vmem:[#allocation9 + $0x18] sm:$0xff] %v1174
    // Predicated region
    $region22: #{tpu_custom_call.1} parent=1 // pred_check
      _
    $region23: #{tpu_custom_call.1} parent=1 // pred_check_branch
      %1182 = sbr.rel (0) target = $region25
    $region24: #{tpu_custom_call.1} parent=1 // pred_region
      %s1184 = ssub.s32 512, 512
      %1185 = vsyncadd [#allocation6], %s1184
      %s1186 = sshll.u32 [#allocation9], 4
      %s1187 = int_to_ptr.vmem [resolvable:$true] %s1186
      %1192 = dma.vmem_to_hbm [thread:$0]  %s1187, 512, %s3, [#allocation6], 128, 128, 8
    $region25: #{tpu_custom_call.1} parent=1 // pred_fallthru
      _
    // Predicated region
    $region26: #{tpu_custom_call.1} parent=1 // pred_check
      _
    $region27: #{tpu_custom_call.1} parent=1 // pred_check_branch
      %1194 = sbr.rel (0) target = $region29
    $region28: #{tpu_custom_call.1} parent=1 // pred_region
      %1195 = dma.done [#allocation6], 512
    $region29: #{tpu_custom_call.1} parent=1 // pred_fallthru
      _
    %1196 = vsyncpa [#allocation5], 1
    %1197 = vsyncpa [#allocation8], 1
    %1198 = vsyncpa [#allocation6], 1

</llo_original>
